<compile_context>
chip_gen: v7x
topology: tpu7x:2x2x1
jax: 0.10.0
libtpu: 0.0.40
codegen_flags: <defaults>
</compile_context>

<pallas_src>
import numpy as np
import jax
import jax.numpy as jnp
from jax.experimental import pallas as pl
from jax.experimental.pallas import tpu as pltpu

KH = KW = 7
PAD = 2
STD_MIN = 0.8
STD_MAX = 1.2


def gaussian2d_unnormalized(shape=(7, 7), sigma=1.0):
    """Same as the PyTorch helper: MATLAB fspecial('gaussian') without norm."""
    m, n = [(ss - 1.0) / 2.0 for ss in shape]
    y, x = np.ogrid[-m:m + 1, -n:n + 1]
    h = np.exp(-(x * x + y * y) / (2.0 * sigma * sigma))
    h[h < np.finfo(h.dtype).eps * h.max()] = 0
    return jnp.asarray(h, dtype=jnp.float32)


def _round_up(x, m):
    return ((x + m - 1) // m) * m


def _blur_kernel(a_ref, b_ref, x_ref, o_ref):
    # a_ref: (C, Ho_pad, H)      H-direction (column) banded conv matrices.
    # b_ref: (C, W, Wlane)       W-direction (row) banded conv matrices
    #                            (1/(2*pi*std^2) amplitude folded in).
    # x_ref: (1, C, H, W)        raw (unpadded) image for one batch element.
    # o_ref: (1, 1, Ho_pad, Wlane) lane-dense output block.
    C = x_ref.shape[1]

    # Independent per-channel partial results — both matmuls per channel run on
    # the MXU with f32 accumulation.
    parts = []
    # TODO(synk): for large C switch to lax.fori_loop(..., unroll=True) over
    # channels to keep trace size and vreg live-ranges bounded.
    for c in range(C):
        t = jnp.dot(a_ref[c], x_ref[0, c],
                    preferred_element_type=jnp.float32)            # (Ho_pad, W)
        parts.append(jnp.dot(t, b_ref[c],
                             preferred_element_type=jnp.float32))  # (Ho_pad, Wlane)

    # Short tree reduction over channels (breaks the serial accumulator chain).
    while len(parts) > 1:
        nxt = [parts[i] + parts[i + 1] for i in range(0, len(parts) - 1, 2)]
        if len(parts) % 2:
            nxt.append(parts[-1])
        parts = nxt

    o_ref[0, 0, :, :] = parts[0].astype(o_ref.dtype)


def blur_layer_forward(img_4d, stds):
    """img_4d: (B, C, H, W) float32. stds: (C, 1) per-emitter std.
    Returns (out, weights): out == F.conv2d(img, MultipleGaussians, padding=2)."""
    B, C, H, W = img_4d.shape
    Hout, Wout = H - 2, W - 2                      # 7x7 conv with padding=2
    Ho_pad = _round_up(Hout, 8)                    # sublane-dense output rows
    Wlane = max(128, _round_up(Wout, 128))         # lane-dense output width

    std = stds.reshape(C).astype(jnp.float32)
    sig2 = std * std
    amp = 1.0 / (2.0 * np.pi * sig2)               # (C,)

    # Exact separable 1D factors of gauss ** (1/std^2).
    d = jnp.arange(KH, dtype=jnp.float32) - (KH - 1) / 2.0           # -3..3
    g1d = jnp.exp(-(d * d)[None, :] / (2.0 * sig2[:, None]))         # (C, 7)
    col1d = g1d                                                      # H direction
    row1d = g1d * amp[:, None]                                       # W direction (amplitude here)

    # Full per-channel 7x7 weights (what the PyTorch module materializes).
    weights = col1d[:, :, None] * row1d[:, None, :]                  # (C, 7, 7)

    # H-direction banded matrix A[c]: out row i <- sum_j col1d[j - i + PAD] * x[j, :].
    # The clipped band implements the padding=2 zero-padding implicitly.
    ii = jnp.arange(Ho_pad)[:, None]
    jj = jnp.arange(H)[None, :]
    kt = jj - ii + PAD
    a_valid = (kt >= 0) & (kt < KH) & (ii < Hout)
    A = jnp.where(a_valid[None], col1d[:, jnp.clip(kt, 0, KH - 1)], 0.0)   # (C, Ho_pad, H)

    # W-direction banded matrix Bm[c]: out col w <- sum_l row1d[l - w + PAD] * y[:, l].
    ll = jnp.arange(W)[:, None]
    ww = jnp.arange(Wlane)[None, :]
    kt = ll - ww + PAD
    b_valid = (kt >= 0) & (kt < KW) & (ww < Wout)
    Bm = jnp.where(b_valid[None], row1d[:, jnp.clip(kt, 0, KW - 1)], 0.0)  # (C, W, Wlane)

    # TODO(synk): for large H*W*C add an H-tile grid axis with a 6-row halo so
    # each block (and its double buffer) stays well inside v7x's 64 MiB VMEM.
    out_padded = pl.pallas_call(
        _blur_kernel,
        out_shape=jax.ShapeDtypeStruct((B, 1, Ho_pad, Wlane), img_4d.dtype),
        grid=(B,),
        in_specs=[
            pl.BlockSpec((C, Ho_pad, H), lambda b: (0, 0, 0)),      # A (resident)
            pl.BlockSpec((C, W, Wlane), lambda b: (0, 0, 0)),       # Bm (resident)
            pl.BlockSpec((1, C, H, W), lambda b: (b, 0, 0, 0)),     # raw image
        ],
        out_specs=pl.BlockSpec((1, 1, Ho_pad, Wlane), lambda b: (b, 0, 0, 0)),
        compiler_params=pltpu.CompilerParams(
            dimension_semantics=("parallel",),           # 2 steps -> both v7x TCs
            vmem_limit_bytes=32 * 1024 * 1024,           # headroom on 64 MiB v7x
        ),
    )(A, Bm, img_4d)

    # Slice the valid window in the wrapper (kernel stores stay lane-dense).
    return out_padded[:, :, :Hout, :Wout], weights


if __name__ == "__main__":
    key = jax.random.PRNGKey(0)
    k_img, k_std = jax.random.split(key)

    B, C, H, W = 2, 4, 16, 16
    img = jax.random.uniform(k_img, (B, C, H, W), dtype=jnp.float32)

    # The PyTorch module samples stds with torch.rand each forward; here we
    # sample them deterministically from a fixed JAX key (same distribution).
    stds = STD_MIN + (STD_MAX - STD_MIN) * jax.random.uniform(
        k_std, (C, 1), dtype=jnp.float32)

    out, weights = blur_layer_forward(img, stds)
    out = jax.block_until_ready(out)

    # Sanity: separable weights == module's pow-based construction.
    gauss = gaussian2d_unnormalized(shape=(KH, KW), sigma=1.0)
    s2 = stds.reshape(C, 1, 1).astype(jnp.float32) ** 2
    w_module = (1.0 / (2.0 * np.pi * s2)) * jnp.power(gauss[None, :, :], 1.0 / s2)
    assert jnp.allclose(weights, w_module, atol=1e-5, rtol=1e-5), float(
        jnp.max(jnp.abs(weights - w_module)))

    # Reference: lax conv (cross-correlation, same semantics as F.conv2d).
    ref = jax.lax.conv_general_dilated(
        img, weights[None, :, :, :], window_strides=(1, 1),
        padding=((PAD, PAD), (PAD, PAD)),
        dimension_numbers=("NCHW", "OIHW", "NCHW"),
        precision=jax.lax.Precision.HIGHEST)

    assert out.shape == (B, 1, H - 2, W - 2), out.shape
    err = float(jnp.max(jnp.abs(out - ref)))
    assert err < 1e-4, err
    print("KERNEL_OK")
</pallas_src>

<mosaic_0001>
module attributes {stable_mosaic.version = 11 : i64} {
  func.func @_blur_kernel(%arg0: i32, %arg1: memref<4x16x16xf32, #tpu.memory_space<vmem>>, %arg2: memref<4x16x128xf32, #tpu.memory_space<vmem>>, %arg3: memref<1x4x16x16xf32, #tpu.memory_space<vmem>>, %arg4: memref<1x1x16x128xf32, #tpu.memory_space<vmem>>) attributes {dimension_semantics = [#tpu.dimension_semantics<parallel>], iteration_bounds = array<i64: 2>, scalar_prefetch = 0 : i64, scratch_operands = 0 : i64, tpu.core_type = #tpu.core_type<tc>, window_params = [{pipeline_mode = #tpu.pipeline_mode<synchronous>, transform_indices = @transform_0, window_bounds = array<i64: 4, 16, 16>}, {pipeline_mode = #tpu.pipeline_mode<synchronous>, transform_indices = @transform_1, window_bounds = array<i64: 4, 16, 128>}, {transform_indices = @transform_2, window_bounds = array<i64: 1, 4, 16, 16>}, {transform_indices = @transform_3, window_bounds = array<i64: 1, 1, 16, 128>}]} {
    %c0 = arith.constant 0 : index
    %c0_0 = arith.constant 0 : index
    %c0_1 = arith.constant 0 : index
    %0 = vector.load %arg1[%c0, %c0_0, %c0_1] : memref<4x16x16xf32, #tpu.memory_space<vmem>>, vector<1x16x16xf32>
    %1 = vector.shape_cast %0 : vector<1x16x16xf32> to vector<16x16xf32>
    %c0_2 = arith.constant 0 : index
    %c0_3 = arith.constant 0 : index
    %c0_4 = arith.constant 0 : index
    %c0_5 = arith.constant 0 : index
    %2 = vector.load %arg3[%c0_2, %c0_3, %c0_4, %c0_5] : memref<1x4x16x16xf32, #tpu.memory_space<vmem>>, vector<1x1x16x16xf32>
    %3 = vector.shape_cast %2 : vector<1x1x16x16xf32> to vector<16x16xf32>
    %cst = arith.constant dense<0.000000e+00> : vector<16x16xf32>
    %4 = tpu.matmul %1, %3, %cst {dimension_numbers = #tpu.dot_dimension_numbers<[1], [0], [0], [1], [0, 0, 1, 1], [], []>} : vector<16x16xf32>, vector<16x16xf32>, vector<16x16xf32> -> vector<16x16xf32>
    %c0_6 = arith.constant 0 : index
    %c0_7 = arith.constant 0 : index
    %c0_8 = arith.constant 0 : index
    %5 = vector.load %arg2[%c0_6, %c0_7, %c0_8] : memref<4x16x128xf32, #tpu.memory_space<vmem>>, vector<1x16x128xf32>
    %6 = vector.shape_cast %5 : vector<1x16x128xf32> to vector<16x128xf32>
    %cst_9 = arith.constant dense<0.000000e+00> : vector<16x128xf32>
    %7 = tpu.matmul %4, %6, %cst_9 {dimension_numbers = #tpu.dot_dimension_numbers<[1], [0], [0], [1], [0, 0, 1, 1], [], []>} : vector<16x16xf32>, vector<16x128xf32>, vector<16x128xf32> -> vector<16x128xf32>
    %c1 = arith.constant 1 : index
    %c0_10 = arith.constant 0 : index
    %c0_11 = arith.constant 0 : index
    %8 = vector.load %arg1[%c1, %c0_10, %c0_11] : memref<4x16x16xf32, #tpu.memory_space<vmem>>, vector<1x16x16xf32>
    %9 = vector.shape_cast %8 : vector<1x16x16xf32> to vector<16x16xf32>
    %c0_12 = arith.constant 0 : index
    %c1_13 = arith.constant 1 : index
    %c0_14 = arith.constant 0 : index
    %c0_15 = arith.constant 0 : index
    %10 = vector.load %arg3[%c0_12, %c1_13, %c0_14, %c0_15] : memref<1x4x16x16xf32, #tpu.memory_space<vmem>>, vector<1x1x16x16xf32>
    %11 = vector.shape_cast %10 : vector<1x1x16x16xf32> to vector<16x16xf32>
    %cst_16 = arith.constant dense<0.000000e+00> : vector<16x16xf32>
    %12 = tpu.matmul %9, %11, %cst_16 {dimension_numbers = #tpu.dot_dimension_numbers<[1], [0], [0], [1], [0, 0, 1, 1], [], []>} : vector<16x16xf32>, vector<16x16xf32>, vector<16x16xf32> -> vector<16x16xf32>
    %c1_17 = arith.constant 1 : index
    %c0_18 = arith.constant 0 : index
    %c0_19 = arith.constant 0 : index
    %13 = vector.load %arg2[%c1_17, %c0_18, %c0_19] : memref<4x16x128xf32, #tpu.memory_space<vmem>>, vector<1x16x128xf32>
    %14 = vector.shape_cast %13 : vector<1x16x128xf32> to vector<16x128xf32>
    %cst_20 = arith.constant dense<0.000000e+00> : vector<16x128xf32>
    %15 = tpu.matmul %12, %14, %cst_20 {dimension_numbers = #tpu.dot_dimension_numbers<[1], [0], [0], [1], [0, 0, 1, 1], [], []>} : vector<16x16xf32>, vector<16x128xf32>, vector<16x128xf32> -> vector<16x128xf32>
    %c2 = arith.constant 2 : index
    %c0_21 = arith.constant 0 : index
    %c0_22 = arith.constant 0 : index
    %16 = vector.load %arg1[%c2, %c0_21, %c0_22] : memref<4x16x16xf32, #tpu.memory_space<vmem>>, vector<1x16x16xf32>
    %17 = vector.shape_cast %16 : vector<1x16x16xf32> to vector<16x16xf32>
    %c0_23 = arith.constant 0 : index
    %c2_24 = arith.constant 2 : index
    %c0_25 = arith.constant 0 : index
    %c0_26 = arith.constant 0 : index
    %18 = vector.load %arg3[%c0_23, %c2_24, %c0_25, %c0_26] : memref<1x4x16x16xf32, #tpu.memory_space<vmem>>, vector<1x1x16x16xf32>
    %19 = vector.shape_cast %18 : vector<1x1x16x16xf32> to vector<16x16xf32>
    %cst_27 = arith.constant dense<0.000000e+00> : vector<16x16xf32>
    %20 = tpu.matmul %17, %19, %cst_27 {dimension_numbers = #tpu.dot_dimension_numbers<[1], [0], [0], [1], [0, 0, 1, 1], [], []>} : vector<16x16xf32>, vector<16x16xf32>, vector<16x16xf32> -> vector<16x16xf32>
    %c2_28 = arith.constant 2 : index
    %c0_29 = arith.constant 0 : index
    %c0_30 = arith.constant 0 : index
    %21 = vector.load %arg2[%c2_28, %c0_29, %c0_30] : memref<4x16x128xf32, #tpu.memory_space<vmem>>, vector<1x16x128xf32>
    %22 = vector.shape_cast %21 : vector<1x16x128xf32> to vector<16x128xf32>
    %cst_31 = arith.constant dense<0.000000e+00> : vector<16x128xf32>
    %23 = tpu.matmul %20, %22, %cst_31 {dimension_numbers = #tpu.dot_dimension_numbers<[1], [0], [0], [1], [0, 0, 1, 1], [], []>} : vector<16x16xf32>, vector<16x128xf32>, vector<16x128xf32> -> vector<16x128xf32>
    %c3 = arith.constant 3 : index
    %c0_32 = arith.constant 0 : index
    %c0_33 = arith.constant 0 : index
    %24 = vector.load %arg1[%c3, %c0_32, %c0_33] : memref<4x16x16xf32, #tpu.memory_space<vmem>>, vector<1x16x16xf32>
    %25 = vector.shape_cast %24 : vector<1x16x16xf32> to vector<16x16xf32>
    %c0_34 = arith.constant 0 : index
    %c3_35 = arith.constant 3 : index
    %c0_36 = arith.constant 0 : index
    %c0_37 = arith.constant 0 : index
    %26 = vector.load %arg3[%c0_34, %c3_35, %c0_36, %c0_37] : memref<1x4x16x16xf32, #tpu.memory_space<vmem>>, vector<1x1x16x16xf32>
    %27 = vector.shape_cast %26 : vector<1x1x16x16xf32> to vector<16x16xf32>
    %cst_38 = arith.constant dense<0.000000e+00> : vector<16x16xf32>
    %28 = tpu.matmul %25, %27, %cst_38 {dimension_numbers = #tpu.dot_dimension_numbers<[1], [0], [0], [1], [0, 0, 1, 1], [], []>} : vector<16x16xf32>, vector<16x16xf32>, vector<16x16xf32> -> vector<16x16xf32>
    %c3_39 = arith.constant 3 : index
    %c0_40 = arith.constant 0 : index
    %c0_41 = arith.constant 0 : index
    %29 = vector.load %arg2[%c3_39, %c0_40, %c0_41] : memref<4x16x128xf32, #tpu.memory_space<vmem>>, vector<1x16x128xf32>
    %30 = vector.shape_cast %29 : vector<1x16x128xf32> to vector<16x128xf32>
    %cst_42 = arith.constant dense<0.000000e+00> : vector<16x128xf32>
    %31 = tpu.matmul %28, %30, %cst_42 {dimension_numbers = #tpu.dot_dimension_numbers<[1], [0], [0], [1], [0, 0, 1, 1], [], []>} : vector<16x16xf32>, vector<16x128xf32>, vector<16x128xf32> -> vector<16x128xf32>
    %32 = arith.addf %7, %15 : vector<16x128xf32>
    %33 = arith.addf %23, %31 : vector<16x128xf32>
    %34 = arith.addf %32, %33 : vector<16x128xf32>
    %c0_43 = arith.constant 0 : index
    %c0_44 = arith.constant 0 : index
    %c0_45 = arith.constant 0 : index
    %c0_46 = arith.constant 0 : index
    %35 = vector.load %arg4[%c0_43, %c0_44, %c0_45, %c0_46] : memref<1x1x16x128xf32, #tpu.memory_space<vmem>>, vector<1x1x16x128xf32>
    %36 = vector.shape_cast %35 : vector<1x1x16x128xf32> to vector<16x128xf32>
    %37 = vector.shape_cast %34 : vector<16x128xf32> to vector<1x1x16x128xf32>
    tpu.vector_store %arg4[%c0_43, %c0_44, %c0_45, %c0_46], %37 {strides = array<i32>} : memref<1x1x16x128xf32, #tpu.memory_space<vmem>>, vector<1x1x16x128xf32>,
    return
  }
  func.func @transform_0(%arg0: i32) -> (i32, i32, i32) {
    %c0_i32 = arith.constant 0 : i32
    %c0_i32_0 = arith.constant 0 : i32
    %c0_i32_1 = arith.constant 0 : i32
    %c0_i32_2 = arith.constant 0 : i32
    return %c0_i32, %c0_i32_0, %c0_i32_1 : i32, i32, i32
  }
  func.func @transform_1(%arg0: i32) -> (i32, i32, i32) {
    %c0_i32 = arith.constant 0 : i32
    %c0_i32_0 = arith.constant 0 : i32
    %c0_i32_1 = arith.constant 0 : i32
    %c0_i32_2 = arith.constant 0 : i32
    return %c0_i32, %c0_i32_0, %c0_i32_1 : i32, i32, i32
  }
  func.func @transform_2(%arg0: i32) -> (i32, i32, i32, i32) {
    %c0_i32 = arith.constant 0 : i32
    %c0_i32_0 = arith.constant 0 : i32
    %c0_i32_1 = arith.constant 0 : i32
    %c0_i32_2 = arith.constant 0 : i32
    return %arg0, %c0_i32, %c0_i32_0, %c0_i32_1 : i32, i32, i32, i32
  }
  func.func @transform_3(%arg0: i32) -> (i32, i32, i32, i32) {
    %c0_i32 = arith.constant 0 : i32
    %c0_i32_0 = arith.constant 0 : i32
    %c0_i32_1 = arith.constant 0 : i32
    %c0_i32_2 = arith.constant 0 : i32
    return %arg0, %c0_i32, %c0_i32_0, %c0_i32_1 : i32, i32, i32, i32
  }
}

</mosaic_0001>

<llo_original>
// kernel: tpu_custom_call.1
$region0: #{tpu_custom_call.1}
  #allocation0 [shape = 'u32[]', space=smem, size = 0x4, offset = 0x4, fixed_abs, tag = 'smem constant byte address 0x4 - core index']
  #allocation1 [shape = 'u32[144,128]{1,0:T(1,128)}', space=vmem, size = 0x12000, scoped, tag = 'internal scratch']
  %s0 = inlined_call_operand.hbm [shape: f32[4,16,16], index: 0, kind: input, shape index: {}]
  %s1 = inlined_call_operand.hbm [shape: f32[4,16,128], index: 1, kind: input, shape index: {}]
  %s2 = inlined_call_operand.hbm [shape: f32[2,4,16,16], index: 2, kind: input, shape index: {}]
  %s3 = inlined_call_operand.hbm [shape: f32[2,1,16,128], index: 3, kind: output, shape index: {}]
  %s4 = sld [smem:[#allocation0]]
  $region57: #{tpu_custom_call.1} parent=0
    _
  %s6 = ssub.s32 1, %s4
  %s7 = scalar_select 0, %s6, %s4
  $region1: #{tpu_custom_call.1} parent=0
    #allocation2 [shape = 'u8[32768]{0}', space=vmem, size = 0x8000, scoped, tag = 'input window, operand 0, single buffered']
    #allocation3 [shape = 's32[2]{0}', space=sflag, size = 0x8, scoped, tag = 'scoped memory for tpu_custom_call.1']
    #allocation4 [shape = 's32[2]{0}', space=sflag, size = 0x8, scoped, tag = 'scoped memory for tpu_custom_call.1']
    #allocation5 [shape = 'u8[32768]{0}', space=vmem, size = 0x8000, scoped, tag = 'input window, operand 1, single buffered']
    #allocation6 [shape = 's32[1]{0}', space=sflag, size = 0x4, scoped, tag = 'scoped memory for tpu_custom_call.1']
    #allocation7 [shape = 'u8[65536]{0}', space=vmem, size = 0x10000, scoped, tag = 'input window, operand 2']
    #allocation8 [shape = 'u8[16384]{0}', space=vmem, size = 0x4000, scoped, tag = 'output window, operand 0']
    %8 = vsyncpa [#allocation3], 0
    %9 = vsyncpa [#allocation6], 0
    %10 = vsyncpa [#allocation4], 0
    %s11 = scalar_lea.sflag [#allocation4], 1
    %12 = vsyncpa %s11, 0
    loop: start=0, step=1, limit=4
    $region2: #{tpu_custom_call.1} parent=1 // loop_pre_header
      _
    $region3: #{tpu_custom_call.1} parent=1 // loop_header
      %s14 = sphi 0, %s18
      %p15 = scmp.ge.s32.totalorder %s14, 4
      %s22 = sphi 0, %s22
      %s24 = sphi 0, %s22
      %s25 = sphi 0, %s24
      %s39 = sphi 0, %s25
      %s43 = sphi 0, %s43
      %s45 = sphi 0, %s43
      %s46 = sphi 0, %s45
      %s60 = sphi 0, %s46
      %s66 = sphi 0, %s68
      %s69 = sphi 0, %s66
      %s70 = sphi 0, %s69
      %s86 = sphi 0, %s70
      %s92 = sphi 0, %s94
      %s95 = sphi 0, %s92
      %s96 = sphi 0, %s95
      %s112 = sphi 0, %s96
    $region4: #{tpu_custom_call.1} parent=1 // loop_header_branch
      %17 = sbr.rel (%p15) target = $region8
    $region5: #{tpu_custom_call.1} parent=1 // loop_body
      %s19 = ssub.s32 %s14, 1
      %s20 = ssub.s32 %s14, 2
      %s21 = sadd.s32 %s14, 1
      %s23 = sadd.s32 %s22, 1
      %p26 = scmp.eq.s32.totalorder %s14, 1
      %p27 = scmp.ne.s32.totalorder %s22, %s24
      %p28 = scmp.eq.s32.totalorder %s14, 0
      %p29 = por %p27, %p28
      %p30 = scmp.ne.s32.totalorder %s22, %s24
      %p31 = scmp.eq.s32.totalorder %s19, 1
      %p32 = por %p30, %p31
      %p33 = scmp.ne.s32.totalorder %s24, %s25
      %p34 = scmp.eq.s32.totalorder %s19, 0
      %p35 = por %p33, %p34
      %p36 = scmp.ne.s32.totalorder %s24, %s25
      %p37 = scmp.eq.s32.totalorder %s20, 1
      %p38 = por %p36, %p37
      %p40 = scmp.ne.s32.totalorder %s25, %s39
      %p41 = scmp.eq.s32.totalorder %s20, 0
      %p42 = por %p40, %p41
      %s44 = sadd.s32 %s43, 1
      %p47 = scmp.eq.s32.totalorder %s14, 1
      %p48 = scmp.ne.s32.totalorder %s43, %s45
      %p49 = scmp.eq.s32.totalorder %s14, 0
      %p50 = por %p48, %p49
      %p51 = scmp.ne.s32.totalorder %s43, %s45
      %p52 = scmp.eq.s32.totalorder %s19, 1
      %p53 = por %p51, %p52
      %p54 = scmp.ne.s32.totalorder %s45, %s46
      %p55 = scmp.eq.s32.totalorder %s19, 0
      %p56 = por %p54, %p55
      %p57 = scmp.ne.s32.totalorder %s45, %s46
      %p58 = scmp.eq.s32.totalorder %s20, 1
      %p59 = por %p57, %p58
      %p61 = scmp.ne.s32.totalorder %s46, %s60
      %p62 = scmp.eq.s32.totalorder %s20, 0
      %p63 = por %p61, %p62
      %s64 = ssub.s32 %s14, %s21
      %p65 = scmp.eq.s32.totalorder %s64, 0
      %s67 = sadd.s32 %s66, 1
      %s68 = scalar_select %p65, %s66, %s67
      %p71 = pneg %p65
      %p72 = scmp.eq.s32.totalorder %s14, 1
      %p73 = por %p71, %p72
      %p74 = scmp.ne.s32.totalorder %s66, %s69
      %p75 = scmp.eq.s32.totalorder %s14, 0
      %p76 = por %p74, %p75
      %p77 = scmp.ne.s32.totalorder %s66, %s69
      %p78 = scmp.eq.s32.totalorder %s19, 1
      %p79 = por %p77, %p78
      %p80 = scmp.ne.s32.totalorder %s69, %s70
      %p81 = scmp.eq.s32.totalorder %s19, 0
      %p82 = por %p80, %p81
      %p83 = scmp.ne.s32.totalorder %s69, %s70
      %p84 = scmp.eq.s32.totalorder %s20, 1
      %p85 = por %p83, %p84
      %p87 = scmp.ne.s32.totalorder %s70, %s86
      %p88 = scmp.eq.s32.totalorder %s20, 0
      %p89 = por %p87, %p88
      %s90 = ssub.s32 %s14, %s21
      %p91 = scmp.eq.s32.totalorder %s90, 0
      %s93 = sadd.s32 %s92, 1
      %s94 = scalar_select %p91, %s92, %s93
      %p97 = pneg %p91
      %p98 = scmp.eq.s32.totalorder %s14, 1
      %p99 = por %p97, %p98
      %p100 = scmp.ne.s32.totalorder %s92, %s95
      %p101 = scmp.eq.s32.totalorder %s14, 0
      %p102 = por %p100, %p101
      %p103 = scmp.ne.s32.totalorder %s92, %s95
      %p104 = scmp.eq.s32.totalorder %s19, 1
      %p105 = por %p103, %p104
      %p106 = scmp.ne.s32.totalorder %s95, %s96
      %p107 = scmp.eq.s32.totalorder %s19, 0
      %p108 = por %p106, %p107
      %p109 = scmp.ne.s32.totalorder %s95, %s96
      %p110 = scmp.eq.s32.totalorder %s20, 1
      %p111 = por %p109, %p110
      %p113 = scmp.ne.s32.totalorder %s96, %s112
      %p114 = scmp.eq.s32.totalorder %s20, 0
      %p115 = por %p113, %p114
      %p116 = scmp.le.s32.totalorder 1, %s14
      %p117 = scmp.lt.s32.totalorder %s14, 3
      %p118 = pnand %p116, %p117
      %p119 = pneg %p118
      // Predicated region
      $region9: #{tpu_custom_call.1} parent=5 // pred_check
        _
      $region10: #{tpu_custom_call.1} parent=5 // pred_check_branch
        %121 = sbr.rel (%p118) target = $region12
      $region11: #{tpu_custom_call.1} parent=5 // pred_region
        %s122 = ssub.s32 %s14, 1
        // Predicated region
        $region13: #{tpu_custom_call.1} parent=11 // pred_check
          %p123 = pneg %p35
        $region14: #{tpu_custom_call.1} parent=11 // pred_check_branch
          %125 = sbr.rel (%p123) target = $region16
        $region15: #{tpu_custom_call.1} parent=11 // pred_region
          %s127 = ssub.s32 1024, 1024
          %128 = vsyncadd [#allocation3], %s127
          %s129 = sshll.u32 [#allocation2], 4
          %s130 = int_to_ptr.vmem [resolvable:$true] %s129
          %135 = dma.hbm_to_vmem [thread:$0]  %s0, 1024, %s130, [#allocation3], 128, 128, 8
        $region16: #{tpu_custom_call.1} parent=11 // pred_fallthru
          _
        // Predicated region
        $region17: #{tpu_custom_call.1} parent=11 // pred_check
          %p136 = pneg %p56
        $region18: #{tpu_custom_call.1} parent=11 // pred_check_branch
          %138 = sbr.rel (%p136) target = $region20
        $region19: #{tpu_custom_call.1} parent=11 // pred_region
          %s140 = ssub.s32 1024, 1024
          %141 = vsyncadd [#allocation6], %s140
          %s142 = sshll.u32 [#allocation5], 4
          %s143 = int_to_ptr.vmem [resolvable:$true] %s142
          %148 = dma.hbm_to_vmem [thread:$0]  %s1, 1024, %s143, [#allocation6], 128, 128, 8
        $region20: #{tpu_custom_call.1} parent=11 // pred_fallthru
          _
      $region12: #{tpu_custom_call.1} parent=5 // pred_fallthru
        _
      %p149 = scmp.lt.s32.totalorder %s14, 2
      // Predicated region
      $region21: #{tpu_custom_call.1} parent=5 // pred_check
        %p150 = pneg %p149
      $region22: #{tpu_custom_call.1} parent=5 // pred_check_branch
        %152 = sbr.rel (%p150) target = $region24
      $region23: #{tpu_custom_call.1} parent=5 // pred_region
        // Predicated region
        $region25: #{tpu_custom_call.1} parent=23 // pred_check
          %p153 = pneg %p76
        $region26: #{tpu_custom_call.1} parent=23 // pred_check_branch
          %155 = sbr.rel (%p153) target = $region28
        $region27: #{tpu_custom_call.1} parent=23 // pred_region
          %s156 = sand.u32 %s14, 1
          %s157 = scalar_lea.sflag [#allocation3], %s156
          %s158 = sand.u32 %s66, 1
          %s159 = smul.addr %s158, 64
          %s160 = scalar_lea.vmem [#allocation7], %s159
          %s162 = ssub.s32 1024, 1024
          %163 = vsyncadd %s157, %s162
          %s164 = smul.addr %s14, 8
          %s165 = smul.addr %s164, 128
          %s166 = scalar_lea.hbm %s2, %s165
          %s167 = sshll.u32 %s160, 4
          %s168 = int_to_ptr.vmem [resolvable:$true] %s167
          %173 = dma.hbm_to_vmem [thread:$0]  %s166, 1024, %s168, %s157, 128, 128, 8
        $region28: #{tpu_custom_call.1} parent=23 // pred_fallthru
          _
      $region24: #{tpu_custom_call.1} parent=5 // pred_fallthru
        _
      %p174 = scmp.le.s32.totalorder 1, %s14
      %p175 = scmp.lt.s32.totalorder %s14, 3
      %p176 = pnand %p174, %p175
      %p177 = pneg %p176
      // Predicated region
      $region29: #{tpu_custom_call.1} parent=5 // pred_check
        _
      $region30: #{tpu_custom_call.1} parent=5 // pred_check_branch
        %179 = sbr.rel (%p176) target = $region32
      $region31: #{tpu_custom_call.1} parent=5 // pred_region
        %s180 = ssub.s32 %s14, 1
        // Predicated region
        $region33: #{tpu_custom_call.1} parent=31 // pred_check
          %p181 = pneg %p35
        $region34: #{tpu_custom_call.1} parent=31 // pred_check_branch
          %183 = sbr.rel (%p181) target = $region36
        $region35: #{tpu_custom_call.1} parent=31 // pred_region
          %184 = dma.done [#allocation3], 1024
        $region36: #{tpu_custom_call.1} parent=31 // pred_fallthru
          _
        // Predicated region
        $region37: #{tpu_custom_call.1} parent=31 // pred_check
          %p185 = pneg %p56
        $region38: #{tpu_custom_call.1} parent=31 // pred_check_branch
          %187 = sbr.rel (%p185) target = $region40
        $region39: #{tpu_custom_call.1} parent=31 // pred_region
          %188 = dma.done [#allocation6], 1024
        $region40: #{tpu_custom_call.1} parent=31 // pred_fallthru
          _
        %s189 = sand.u32 %s19, 1
        %s190 = scalar_lea.sflag [#allocation3], %s189
        %s191 = sand.u32 %s69, 1
        %s192 = smul.addr %s191, 64
        %s193 = scalar_lea.vmem [#allocation7], %s192
        // Predicated region
        $region41: #{tpu_custom_call.1} parent=31 // pred_check
          %p194 = pneg %p82
        $region42: #{tpu_custom_call.1} parent=31 // pred_check_branch
          %196 = sbr.rel (%p194) target = $region44
        $region43: #{tpu_custom_call.1} parent=31 // pred_region
          %197 = dma.done %s190, 1024
        $region44: #{tpu_custom_call.1} parent=31 // pred_fallthru
          _
        %p198 = pneg %p35
        %p199 = pneg %p32
        %p200 = pneg %p56
        %p201 = pneg %p53
        %s202 = sand.u32 %s19, 1
        %s203 = scalar_lea.sflag [#allocation3], %s202
        %s204 = sand.u32 %s69, 1
        %s205 = smul.addr %s204, 64
        %s206 = scalar_lea.vmem [#allocation7], %s205
        %p207 = pneg %p82
        %p208 = pneg %p79
        %p209 = pneg %p108
        %p210 = pneg %p105
        %s211 = sand.u32 %s95, 1
        %s212 = scalar_lea.sflag [#allocation4], %s211
        %s213 = sand.u32 %s95, 1
        %s214 = smul.addr %s213, 16
        %s215 = scalar_lea.vmem [#allocation8], %s214
        %v216 = vld [vmem:[#allocation2] sm:$0xff]
        %v217 = vld [vmem:[#allocation2 + $0x8] sm:$0xff]
        %v218 = vld [vmem:[%s193] sm:$0xff]
        %v219 = vld [vmem:[%s193 + $0x8] sm:$0xff]
        %vm220 = vcmask 130048
        %v222 = vsel %vm220, %v216, 0
        %v225 = vsel %vm220, %v217, 0
        %227 = vmatprep.subr.mxu0 0.0
        %228 = vmatpush1.msra.mxu0 %v218
        %229 = vmatprep.subr.mxu0 0.0
        %230 = vmatpush1.msra.mxu0 %v219
        %231 = vmatprep.subr.mxu0 0.0
        %232 = vmatpush1.msra.mxu0 0.0
        %233 = vmatprep.subr.mxu0 0.0
        %234 = vmatpush1.msra.mxu0 0.0
        %235 = vmatprep.subr.mxu0 0.0
        %236 = vmatpush1.msra.mxu0 0.0
        %237 = vmatprep.subr.mxu0 0.0
        %238 = vmatpush1.msra.mxu0 0.0
        %239 = vmatprep.subr.mxu0 0.0
        %240 = vmatpush1.msra.mxu0 0.0
        %241 = vmatprep.subr.mxu0 0.0
        %242 = vmatpush1.msra.mxu0 0.0
        %243 = vmatprep.subr.mxu0 0.0
        %244 = vmatpush1.msra.mxu0 0.0
        %245 = vmatprep.subr.mxu0 0.0
        %246 = vmatpush1.msra.mxu0 0.0
        %247 = vmatprep.subr.mxu0 0.0
        %248 = vmatpush1.msra.mxu0 0.0
        %249 = vmatprep.subr.mxu0 0.0
        %250 = vmatpush1.msra.mxu0 0.0
        %251 = vmatprep.subr.mxu0 0.0
        %252 = vmatpush1.msra.mxu0 0.0
        %253 = vmatprep.subr.mxu0 0.0
        %254 = vmatpush1.msra.mxu0 0.0
        %255 = vmatprep.subr.mxu0 0.0
        %256 = vmatpush1.msra.mxu0 0.0
        %257 = vmatprep.subr.mxu0 0.0
        %258 = vmatpush1.msra.mxu0 0.0
        %259 = vmatprep.subr.mxu0 0.0
        %260 = vmatpush1.msra.mxu0 0.0
        %261 = vmatprep.subr.mxu0 0.0
        %262 = vmatpush1.msra.mxu0 0.0
        %263 = vmatprep.subr.mxu0 0.0
        %264 = vmatpush1.msra.mxu0 0.0
        %265 = vmatprep.subr.mxu0 0.0
        %266 = vmatpush1.msra.mxu0 0.0
        %267 = vmatprep.subr.mxu0 0.0
        %268 = vmatpush1.msra.mxu0 0.0
        %269 = vmatprep.subr.mxu0 0.0
        %270 = vmatpush1.msra.mxu0 0.0
        %271 = vmatprep.subr.mxu0 0.0
        %272 = vmatpush1.msra.mxu0 0.0
        %273 = vmatprep.subr.mxu0 0.0
        %274 = vmatpush1.msra.mxu0 0.0
        %275 = vmatprep.subr.mxu0 0.0
        %276 = vmatpush1.msra.mxu0 0.0
        %277 = vmatprep.subr.mxu0 0.0
        %278 = vmatpush1.msra.mxu0 0.0
        %279 = vmatprep.subr.mxu0 0.0
        %280 = vmatpush1.msra.mxu0 0.0
        %281 = vmatprep.subr.mxu0 0.0
        %282 = vmatpush1.msra.mxu0 0.0
        %283 = vmatprep.subr.mxu0 0.0
        %284 = vmatpush1.msra.mxu0 0.0
        %285 = vmatprep.subr.mxu0 0.0
        %286 = vmatpush1.msra.mxu0 0.0
        %287 = vmatprep.subr.mxu0 0.0
        %288 = vmatpush1.msra.mxu0 0.0
        %289 = vmatprep.subr.mxu0 0.0
        %290 = vmatpush1.msra.mxu0 0.0
        %291 = vmatprep.mubr.f32.mxu0 0.0
        %292 = vmatmul.mubr.f32.gmra.mrb[0].mxu0 %v222
        %v293 = vpop.f32.mrb[0].mxu0
        %v294 = vadd.f32 0.0, %v293
        %v295 = vpop.f32.mrb[0].mxu0
        %296 = vmatprep.mubr.f32.mxu0 0.0
        %297 = vmatmul.mubr.f32.gmra.mrb[0].mxu0 %v225
        %v298 = vpop.f32.mrb[0].mxu0
        %v299 = vadd.f32 0.0, %v298
        %v300 = vpop.f32.mrb[0].mxu0
        %301 = vdwg.mxu0
        %v302 = vld [vmem:[#allocation5] sm:$0xff]
        %v303 = vld [vmem:[#allocation5 + $0x8] sm:$0xff]
        %s304 = scalar_lea.vmem [#allocation2], 16
        %v305 = vld [vmem:[%s304] sm:$0xff]
        %v306 = vld [vmem:[%s304 + $0x8] sm:$0xff]
        %s307 = scalar_lea.vmem %s193, 16 [#allocation7]
        %v308 = vld [vmem:[%s307] sm:$0xff]
        %v309 = vld [vmem:[%s307 + $0x8] sm:$0xff]
        %v311 = vsel %vm220, %v305, 0
        %v314 = vsel %vm220, %v306, 0
        %316 = vmatprep.subr.mxu0 0.0
        %317 = vmatpush1.msra.mxu0 %v308
        %318 = vmatprep.subr.mxu0 0.0
        %319 = vmatpush1.msra.mxu0 %v309
        %320 = vmatprep.subr.mxu0 0.0
        %321 = vmatpush1.msra.mxu0 0.0
        %322 = vmatprep.subr.mxu0 0.0
        %323 = vmatpush1.msra.mxu0 0.0
        %324 = vmatprep.subr.mxu0 0.0
        %325 = vmatpush1.msra.mxu0 0.0
        %326 = vmatprep.subr.mxu0 0.0
        %327 = vmatpush1.msra.mxu0 0.0
        %328 = vmatprep.subr.mxu0 0.0
        %329 = vmatpush1.msra.mxu0 0.0
        %330 = vmatprep.subr.mxu0 0.0
        %331 = vmatpush1.msra.mxu0 0.0
        %332 = vmatprep.subr.mxu0 0.0
        %333 = vmatpush1.msra.mxu0 0.0
        %334 = vmatprep.subr.mxu0 0.0
        %335 = vmatpush1.msra.mxu0 0.0
        %336 = vmatprep.subr.mxu0 0.0
        %337 = vmatpush1.msra.mxu0 0.0
        %338 = vmatprep.subr.mxu0 0.0
        %339 = vmatpush1.msra.mxu0 0.0
        %340 = vmatprep.subr.mxu0 0.0
        %341 = vmatpush1.msra.mxu0 0.0
        %342 = vmatprep.subr.mxu0 0.0
        %343 = vmatpush1.msra.mxu0 0.0
        %344 = vmatprep.subr.mxu0 0.0
        %345 = vmatpush1.msra.mxu0 0.0
        %346 = vmatprep.subr.mxu0 0.0
        %347 = vmatpush1.msra.mxu0 0.0
        %348 = vmatprep.subr.mxu0 0.0
        %349 = vmatpush1.msra.mxu0 0.0
        %350 = vmatprep.subr.mxu0 0.0
        %351 = vmatpush1.msra.mxu0 0.0
        %352 = vmatprep.subr.mxu0 0.0
        %353 = vmatpush1.msra.mxu0 0.0
        %354 = vmatprep.subr.mxu0 0.0
        %355 = vmatpush1.msra.mxu0 0.0
        %356 = vmatprep.subr.mxu0 0.0
        %357 = vmatpush1.msra.mxu0 0.0
        %358 = vmatprep.subr.mxu0 0.0
        %359 = vmatpush1.msra.mxu0 0.0
        %360 = vmatprep.subr.mxu0 0.0
        %361 = vmatpush1.msra.mxu0 0.0
        %362 = vmatprep.subr.mxu0 0.0
        %363 = vmatpush1.msra.mxu0 0.0
        %364 = vmatprep.subr.mxu0 0.0
        %365 = vmatpush1.msra.mxu0 0.0
        %366 = vmatprep.subr.mxu0 0.0
        %367 = vmatpush1.msra.mxu0 0.0
        %368 = vmatprep.subr.mxu0 0.0
        %369 = vmatpush1.msra.mxu0 0.0
        %370 = vmatprep.subr.mxu0 0.0
        %371 = vmatpush1.msra.mxu0 0.0
        %372 = vmatprep.subr.mxu0 0.0
        %373 = vmatpush1.msra.mxu0 0.0
        %374 = vmatprep.subr.mxu0 0.0
        %375 = vmatpush1.msra.mxu0 0.0
        %376 = vmatprep.subr.mxu0 0.0
        %377 = vmatpush1.msra.mxu0 0.0
        %378 = vmatprep.subr.mxu0 0.0
        %379 = vmatpush1.msra.mxu0 0.0
        %380 = vmatprep.mubr.f32.mxu0 0.0
        %381 = vmatmul.mubr.f32.gmra.mrb[0].mxu0 %v311
        %v382 = vpop.f32.mrb[0].mxu0
        %v383 = vadd.f32 0.0, %v382
        %v384 = vpop.f32.mrb[0].mxu0
        %385 = vmatprep.mubr.f32.mxu0 0.0
        %386 = vmatmul.mubr.f32.gmra.mrb[0].mxu0 %v314
        %v387 = vpop.f32.mrb[0].mxu0
        %v388 = vadd.f32 0.0, %v387
        %v389 = vpop.f32.mrb[0].mxu0
        %390 = vdwg.mxu0
        %s391 = scalar_lea.vmem [#allocation5], 16
        %v392 = vld [vmem:[%s391] sm:$0xff]
        %v393 = vld [vmem:[%s391 + $0x8] sm:$0xff]
        %v395 = vsel %vm220, %v383, 0
        %v398 = vsel %vm220, %v388, 0
        %400 = vmatprep.subr.mxu0 0.0
        %401 = vmatpush1.msra.mxu0 %v392
        %402 = vmatprep.subr.mxu0 0.0
        %403 = vmatpush1.msra.mxu0 %v393
        %404 = vmatprep.subr.mxu0 0.0
        %405 = vmatpush1.msra.mxu0 0.0
        %406 = vmatprep.subr.mxu0 0.0
        %407 = vmatpush1.msra.mxu0 0.0
        %408 = vmatprep.subr.mxu0 0.0
        %409 = vmatpush1.msra.mxu0 0.0
        %410 = vmatprep.subr.mxu0 0.0
        %411 = vmatpush1.msra.mxu0 0.0
        %412 = vmatprep.subr.mxu0 0.0
        %413 = vmatpush1.msra.mxu0 0.0
        %414 = vmatprep.subr.mxu0 0.0
        %415 = vmatpush1.msra.mxu0 0.0
        %416 = vmatprep.subr.mxu0 0.0
        %417 = vmatpush1.msra.mxu0 0.0
        %418 = vmatprep.subr.mxu0 0.0
        %419 = vmatpush1.msra.mxu0 0.0
        %420 = vmatprep.subr.mxu0 0.0
        %421 = vmatpush1.msra.mxu0 0.0
        %422 = vmatprep.subr.mxu0 0.0
        %423 = vmatpush1.msra.mxu0 0.0
        %424 = vmatprep.subr.mxu0 0.0
        %425 = vmatpush1.msra.mxu0 0.0
        %426 = vmatprep.subr.mxu0 0.0
        %427 = vmatpush1.msra.mxu0 0.0
        %428 = vmatprep.subr.mxu0 0.0
        %429 = vmatpush1.msra.mxu0 0.0
        %430 = vmatprep.subr.mxu0 0.0
        %431 = vmatpush1.msra.mxu0 0.0
        %432 = vmatprep.subr.mxu0 0.0
        %433 = vmatpush1.msra.mxu0 0.0
        %434 = vmatprep.subr.mxu0 0.0
        %435 = vmatpush1.msra.mxu0 0.0
        %436 = vmatprep.subr.mxu0 0.0
        %437 = vmatpush1.msra.mxu0 0.0
        %438 = vmatprep.subr.mxu0 0.0
        %439 = vmatpush1.msra.mxu0 0.0
        %440 = vmatprep.subr.mxu0 0.0
        %441 = vmatpush1.msra.mxu0 0.0
        %442 = vmatprep.subr.mxu0 0.0
        %443 = vmatpush1.msra.mxu0 0.0
        %444 = vmatprep.subr.mxu0 0.0
        %445 = vmatpush1.msra.mxu0 0.0
        %446 = vmatprep.subr.mxu0 0.0
        %447 = vmatpush1.msra.mxu0 0.0
        %448 = vmatprep.subr.mxu0 0.0
        %449 = vmatpush1.msra.mxu0 0.0
        %450 = vmatprep.subr.mxu0 0.0
        %451 = vmatpush1.msra.mxu0 0.0
        %452 = vmatprep.subr.mxu0 0.0
        %453 = vmatpush1.msra.mxu0 0.0
        %454 = vmatprep.subr.mxu0 0.0
        %455 = vmatpush1.msra.mxu0 0.0
        %456 = vmatprep.subr.mxu0 0.0
        %457 = vmatpush1.msra.mxu0 0.0
        %458 = vmatprep.subr.mxu0 0.0
        %459 = vmatpush1.msra.mxu0 0.0
        %460 = vmatprep.subr.mxu0 0.0
        %461 = vmatpush1.msra.mxu0 0.0
        %462 = vmatprep.subr.mxu0 0.0
        %463 = vmatpush1.msra.mxu0 0.0
        %464 = vmatprep.mubr.f32.mxu0 0.0
        %465 = vmatmul.mubr.f32.gmra.mrb[0].mxu0 %v395
        %v466 = vpop.f32.mrb[0].mxu0
        %v467 = vadd.f32 0.0, %v466
        %v468 = vpop.f32.mrb[0].mxu0
        %469 = vmatprep.mubr.f32.mxu0 0.0
        %470 = vmatmul.mubr.f32.gmra.mrb[0].mxu0 %v398
        %v471 = vpop.f32.mrb[0].mxu0
        %v472 = vadd.f32 0.0, %v471
        %v473 = vpop.f32.mrb[0].mxu0
        %474 = vdwg.mxu0
        %s475 = scalar_lea.vmem [#allocation2], 32
        %v476 = vld [vmem:[%s475] sm:$0xff]
        %v477 = vld [vmem:[%s475 + $0x8] sm:$0xff]
        %s478 = scalar_lea.vmem %s193, 32 [#allocation7]
        %v479 = vld [vmem:[%s478] sm:$0xff]
        %v480 = vld [vmem:[%s478 + $0x8] sm:$0xff]
        %v482 = vsel %vm220, %v476, 0
        %v485 = vsel %vm220, %v477, 0
        %487 = vmatprep.subr.mxu0 0.0
        %488 = vmatpush1.msra.mxu0 %v479
        %489 = vmatprep.subr.mxu0 0.0
        %490 = vmatpush1.msra.mxu0 %v480
        %491 = vmatprep.subr.mxu0 0.0
        %492 = vmatpush1.msra.mxu0 0.0
        %493 = vmatprep.subr.mxu0 0.0
        %494 = vmatpush1.msra.mxu0 0.0
        %495 = vmatprep.subr.mxu0 0.0
        %496 = vmatpush1.msra.mxu0 0.0
        %497 = vmatprep.subr.mxu0 0.0
        %498 = vmatpush1.msra.mxu0 0.0
        %499 = vmatprep.subr.mxu0 0.0
        %500 = vmatpush1.msra.mxu0 0.0
        %501 = vmatprep.subr.mxu0 0.0
        %502 = vmatpush1.msra.mxu0 0.0
        %503 = vmatprep.subr.mxu0 0.0
        %504 = vmatpush1.msra.mxu0 0.0
        %505 = vmatprep.subr.mxu0 0.0
        %506 = vmatpush1.msra.mxu0 0.0
        %507 = vmatprep.subr.mxu0 0.0
        %508 = vmatpush1.msra.mxu0 0.0
        %509 = vmatprep.subr.mxu0 0.0
        %510 = vmatpush1.msra.mxu0 0.0
        %511 = vmatprep.subr.mxu0 0.0
        %512 = vmatpush1.msra.mxu0 0.0
        %513 = vmatprep.subr.mxu0 0.0
        %514 = vmatpush1.msra.mxu0 0.0
        %515 = vmatprep.subr.mxu0 0.0
        %516 = vmatpush1.msra.mxu0 0.0
        %517 = vmatprep.subr.mxu0 0.0
        %518 = vmatpush1.msra.mxu0 0.0
        %519 = vmatprep.subr.mxu0 0.0
        %520 = vmatpush1.msra.mxu0 0.0
        %521 = vmatprep.subr.mxu0 0.0
        %522 = vmatpush1.msra.mxu0 0.0
        %523 = vmatprep.subr.mxu0 0.0
        %524 = vmatpush1.msra.mxu0 0.0
        %525 = vmatprep.subr.mxu0 0.0
        %526 = vmatpush1.msra.mxu0 0.0
        %527 = vmatprep.subr.mxu0 0.0
        %528 = vmatpush1.msra.mxu0 0.0
        %529 = vmatprep.subr.mxu0 0.0
        %530 = vmatpush1.msra.mxu0 0.0
        %531 = vmatprep.subr.mxu0 0.0
        %532 = vmatpush1.msra.mxu0 0.0
        %533 = vmatprep.subr.mxu0 0.0
        %534 = vmatpush1.msra.mxu0 0.0
        %535 = vmatprep.subr.mxu0 0.0
        %536 = vmatpush1.msra.mxu0 0.0
        %537 = vmatprep.subr.mxu0 0.0
        %538 = vmatpush1.msra.mxu0 0.0
        %539 = vmatprep.subr.mxu0 0.0
        %540 = vmatpush1.msra.mxu0 0.0
        %541 = vmatprep.subr.mxu0 0.0
        %542 = vmatpush1.msra.mxu0 0.0
        %543 = vmatprep.subr.mxu0 0.0
        %544 = vmatpush1.msra.mxu0 0.0
        %545 = vmatprep.subr.mxu0 0.0
        %546 = vmatpush1.msra.mxu0 0.0
        %547 = vmatprep.subr.mxu0 0.0
        %548 = vmatpush1.msra.mxu0 0.0
        %549 = vmatprep.subr.mxu0 0.0
        %550 = vmatpush1.msra.mxu0 0.0
        %551 = vmatprep.mubr.f32.mxu0 0.0
        %552 = vmatmul.mubr.f32.gmra.mrb[0].mxu0 %v482
        %v553 = vpop.f32.mrb[0].mxu0
        %v554 = vadd.f32 0.0, %v553
        %v555 = vpop.f32.mrb[0].mxu0
        %556 = vmatprep.mubr.f32.mxu0 0.0
        %557 = vmatmul.mubr.f32.gmra.mrb[0].mxu0 %v485
        %v558 = vpop.f32.mrb[0].mxu0
        %v559 = vadd.f32 0.0, %v558
        %v560 = vpop.f32.mrb[0].mxu0
        %561 = vdwg.mxu0
        %s562 = scalar_lea.vmem [#allocation5], 32
        %v563 = vld [vmem:[%s562] sm:$0xff]
        %v564 = vld [vmem:[%s562 + $0x8] sm:$0xff]
        %s565 = scalar_lea.vmem [#allocation2], 48
        %v566 = vld [vmem:[%s565] sm:$0xff]
        %v567 = vld [vmem:[%s565 + $0x8] sm:$0xff]
        %s568 = scalar_lea.vmem %s193, 48 [#allocation7]
        %v569 = vld [vmem:[%s568] sm:$0xff]
        %v570 = vld [vmem:[%s568 + $0x8] sm:$0xff]
        %v572 = vsel %vm220, %v566, 0
        %v575 = vsel %vm220, %v567, 0
        %577 = vmatprep.subr.mxu0 0.0
        %578 = vmatpush1.msra.mxu0 %v569
        %579 = vmatprep.subr.mxu0 0.0
        %580 = vmatpush1.msra.mxu0 %v570
        %581 = vmatprep.subr.mxu0 0.0
        %582 = vmatpush1.msra.mxu0 0.0
        %583 = vmatprep.subr.mxu0 0.0
        %584 = vmatpush1.msra.mxu0 0.0
        %585 = vmatprep.subr.mxu0 0.0
        %586 = vmatpush1.msra.mxu0 0.0
        %587 = vmatprep.subr.mxu0 0.0
        %588 = vmatpush1.msra.mxu0 0.0
        %589 = vmatprep.subr.mxu0 0.0
        %590 = vmatpush1.msra.mxu0 0.0
        %591 = vmatprep.subr.mxu0 0.0
        %592 = vmatpush1.msra.mxu0 0.0
        %593 = vmatprep.subr.mxu0 0.0
        %594 = vmatpush1.msra.mxu0 0.0
        %595 = vmatprep.subr.mxu0 0.0
        %596 = vmatpush1.msra.mxu0 0.0
        %597 = vmatprep.subr.mxu0 0.0
        %598 = vmatpush1.msra.mxu0 0.0
        %599 = vmatprep.subr.mxu0 0.0
        %600 = vmatpush1.msra.mxu0 0.0
        %601 = vmatprep.subr.mxu0 0.0
        %602 = vmatpush1.msra.mxu0 0.0
        %603 = vmatprep.subr.mxu0 0.0
        %604 = vmatpush1.msra.mxu0 0.0
        %605 = vmatprep.subr.mxu0 0.0
        %606 = vmatpush1.msra.mxu0 0.0
        %607 = vmatprep.subr.mxu0 0.0
        %608 = vmatpush1.msra.mxu0 0.0
        %609 = vmatprep.subr.mxu0 0.0
        %610 = vmatpush1.msra.mxu0 0.0
        %611 = vmatprep.subr.mxu0 0.0
        %612 = vmatpush1.msra.mxu0 0.0
        %613 = vmatprep.subr.mxu0 0.0
        %614 = vmatpush1.msra.mxu0 0.0
        %615 = vmatprep.subr.mxu0 0.0
        %616 = vmatpush1.msra.mxu0 0.0
        %617 = vmatprep.subr.mxu0 0.0
        %618 = vmatpush1.msra.mxu0 0.0
        %619 = vmatprep.subr.mxu0 0.0
        %620 = vmatpush1.msra.mxu0 0.0
        %621 = vmatprep.subr.mxu0 0.0
        %622 = vmatpush1.msra.mxu0 0.0
        %623 = vmatprep.subr.mxu0 0.0
        %624 = vmatpush1.msra.mxu0 0.0
        %625 = vmatprep.subr.mxu0 0.0
        %626 = vmatpush1.msra.mxu0 0.0
        %627 = vmatprep.subr.mxu0 0.0
        %628 = vmatpush1.msra.mxu0 0.0
        %629 = vmatprep.subr.mxu0 0.0
        %630 = vmatpush1.msra.mxu0 0.0
        %631 = vmatprep.subr.mxu0 0.0
        %632 = vmatpush1.msra.mxu0 0.0
        %633 = vmatprep.subr.mxu0 0.0
        %634 = vmatpush1.msra.mxu0 0.0
        %635 = vmatprep.subr.mxu0 0.0
        %636 = vmatpush1.msra.mxu0 0.0
        %637 = vmatprep.subr.mxu0 0.0
        %638 = vmatpush1.msra.mxu0 0.0
        %639 = vmatprep.subr.mxu0 0.0
        %640 = vmatpush1.msra.mxu0 0.0
        %641 = vmatprep.mubr.f32.mxu0 0.0
        %642 = vmatmul.mubr.f32.gmra.mrb[0].mxu0 %v572
        %v643 = vpop.f32.mrb[0].mxu0
        %v644 = vadd.f32 0.0, %v643
        %v645 = vpop.f32.mrb[0].mxu0
        %646 = vmatprep.mubr.f32.mxu0 0.0
        %647 = vmatmul.mubr.f32.gmra.mrb[0].mxu0 %v575
        %v648 = vpop.f32.mrb[0].mxu0
        %v649 = vadd.f32 0.0, %v648
        %v650 = vpop.f32.mrb[0].mxu0
        %651 = vdwg.mxu0
        %s652 = scalar_lea.vmem [#allocation5], 48
        %v653 = vld [vmem:[%s652] sm:$0xff]
        %v654 = vld [vmem:[%s652 + $0x8] sm:$0xff]
        %v656 = vsel %vm220, %v644, 0
        %v659 = vsel %vm220, %v649, 0
        %661 = vmatprep.subr.mxu0 0.0
        %662 = vmatpush1.msra.mxu0 %v653
        %663 = vmatprep.subr.mxu0 0.0
        %664 = vmatpush1.msra.mxu0 %v654
        %665 = vmatprep.subr.mxu0 0.0
        %666 = vmatpush1.msra.mxu0 0.0
        %667 = vmatprep.subr.mxu0 0.0
        %668 = vmatpush1.msra.mxu0 0.0
        %669 = vmatprep.subr.mxu0 0.0
        %670 = vmatpush1.msra.mxu0 0.0
        %671 = vmatprep.subr.mxu0 0.0
        %672 = vmatpush1.msra.mxu0 0.0
        %673 = vmatprep.subr.mxu0 0.0
        %674 = vmatpush1.msra.mxu0 0.0
        %675 = vmatprep.subr.mxu0 0.0
        %676 = vmatpush1.msra.mxu0 0.0
        %677 = vmatprep.subr.mxu0 0.0
        %678 = vmatpush1.msra.mxu0 0.0
        %679 = vmatprep.subr.mxu0 0.0
        %680 = vmatpush1.msra.mxu0 0.0
        %681 = vmatprep.subr.mxu0 0.0
        %682 = vmatpush1.msra.mxu0 0.0
        %683 = vmatprep.subr.mxu0 0.0
        %684 = vmatpush1.msra.mxu0 0.0
        %685 = vmatprep.subr.mxu0 0.0
        %686 = vmatpush1.msra.mxu0 0.0
        %687 = vmatprep.subr.mxu0 0.0
        %688 = vmatpush1.msra.mxu0 0.0
        %689 = vmatprep.subr.mxu0 0.0
        %690 = vmatpush1.msra.mxu0 0.0
        %691 = vmatprep.subr.mxu0 0.0
        %692 = vmatpush1.msra.mxu0 0.0
        %693 = vmatprep.subr.mxu0 0.0
        %694 = vmatpush1.msra.mxu0 0.0
        %695 = vmatprep.subr.mxu0 0.0
        %696 = vmatpush1.msra.mxu0 0.0
        %697 = vmatprep.subr.mxu0 0.0
        %698 = vmatpush1.msra.mxu0 0.0
        %699 = vmatprep.subr.mxu0 0.0
        %700 = vmatpush1.msra.mxu0 0.0
        %701 = vmatprep.subr.mxu0 0.0
        %702 = vmatpush1.msra.mxu0 0.0
        %703 = vmatprep.subr.mxu0 0.0
        %704 = vmatpush1.msra.mxu0 0.0
        %705 = vmatprep.subr.mxu0 0.0
        %706 = vmatpush1.msra.mxu0 0.0
        %707 = vmatprep.subr.mxu0 0.0
        %708 = vmatpush1.msra.mxu0 0.0
        %709 = vmatprep.subr.mxu0 0.0
        %710 = vmatpush1.msra.mxu0 0.0
        %711 = vmatprep.subr.mxu0 0.0
        %712 = vmatpush1.msra.mxu0 0.0
        %713 = vmatprep.subr.mxu0 0.0
        %714 = vmatpush1.msra.mxu0 0.0
        %715 = vmatprep.subr.mxu0 0.0
        %716 = vmatpush1.msra.mxu0 0.0
        %717 = vmatprep.subr.mxu0 0.0
        %718 = vmatpush1.msra.mxu0 0.0
        %719 = vmatprep.subr.mxu0 0.0
        %720 = vmatpush1.msra.mxu0 0.0
        %721 = vmatprep.subr.mxu0 0.0
        %722 = vmatpush1.msra.mxu0 0.0
        %723 = vmatprep.subr.mxu0 0.0
        %724 = vmatpush1.msra.mxu0 0.0
        %725 = vmatprep.mubr.f32.mxu0 0.0
        %726 = vmatmul.mubr.f32.gmra.mrb[0].mxu0 %v656
        %v727 = vpop.f32.mrb[0].mxu0
        %v728 = vadd.f32 0.0, %v727
        %v729 = vpop.f32.mrb[0].mxu0
        %730 = vmatprep.mubr.f32.mxu0 0.0
        %731 = vmatmul.mubr.f32.gmra.mrb[0].mxu0 %v659
        %v732 = vpop.f32.mrb[0].mxu0
        %v733 = vadd.f32 0.0, %v732
        %v734 = vpop.f32.mrb[0].mxu0
        %735 = vdwg.mxu0
        %v737 = vsel %vm220, %v294, 0
        %v740 = vsel %vm220, %v299, 0
        %742 = vmatprep.subr.mxu0 0.0
        %743 = vmatpush1.msra.mxu0 %v302
        %744 = vmatprep.subr.mxu0 0.0
        %745 = vmatpush1.msra.mxu0 %v303
        %746 = vmatprep.subr.mxu0 0.0
        %747 = vmatpush1.msra.mxu0 0.0
        %748 = vmatprep.subr.mxu0 0.0
        %749 = vmatpush1.msra.mxu0 0.0
        %750 = vmatprep.subr.mxu0 0.0
        %751 = vmatpush1.msra.mxu0 0.0
        %752 = vmatprep.subr.mxu0 0.0
        %753 = vmatpush1.msra.mxu0 0.0
        %754 = vmatprep.subr.mxu0 0.0
        %755 = vmatpush1.msra.mxu0 0.0
        %756 = vmatprep.subr.mxu0 0.0
        %757 = vmatpush1.msra.mxu0 0.0
        %758 = vmatprep.subr.mxu0 0.0
        %759 = vmatpush1.msra.mxu0 0.0
        %760 = vmatprep.subr.mxu0 0.0
        %761 = vmatpush1.msra.mxu0 0.0
        %762 = vmatprep.subr.mxu0 0.0
        %763 = vmatpush1.msra.mxu0 0.0
        %764 = vmatprep.subr.mxu0 0.0
        %765 = vmatpush1.msra.mxu0 0.0
        %766 = vmatprep.subr.mxu0 0.0
        %767 = vmatpush1.msra.mxu0 0.0
        %768 = vmatprep.subr.mxu0 0.0
        %769 = vmatpush1.msra.mxu0 0.0
        %770 = vmatprep.subr.mxu0 0.0
        %771 = vmatpush1.msra.mxu0 0.0
        %772 = vmatprep.subr.mxu0 0.0
        %773 = vmatpush1.msra.mxu0 0.0
        %774 = vmatprep.subr.mxu0 0.0
        %775 = vmatpush1.msra.mxu0 0.0
        %776 = vmatprep.subr.mxu0 0.0
        %777 = vmatpush1.msra.mxu0 0.0
        %778 = vmatprep.subr.mxu0 0.0
        %779 = vmatpush1.msra.mxu0 0.0
        %780 = vmatprep.subr.mxu0 0.0
        %781 = vmatpush1.msra.mxu0 0.0
        %782 = vmatprep.subr.mxu0 0.0
        %783 = vmatpush1.msra.mxu0 0.0
        %784 = vmatprep.subr.mxu0 0.0
        %785 = vmatpush1.msra.mxu0 0.0
        %786 = vmatprep.subr.mxu0 0.0
        %787 = vmatpush1.msra.mxu0 0.0
        %788 = vmatprep.subr.mxu0 0.0
        %789 = vmatpush1.msra.mxu0 0.0
        %790 = vmatprep.subr.mxu0 0.0
        %791 = vmatpush1.msra.mxu0 0.0
        %792 = vmatprep.subr.mxu0 0.0
        %793 = vmatpush1.msra.mxu0 0.0
        %794 = vmatprep.subr.mxu0 0.0
        %795 = vmatpush1.msra.mxu0 0.0
        %796 = vmatprep.subr.mxu0 0.0
        %797 = vmatpush1.msra.mxu0 0.0
        %798 = vmatprep.subr.mxu0 0.0
        %799 = vmatpush1.msra.mxu0 0.0
        %800 = vmatprep.subr.mxu0 0.0
        %801 = vmatpush1.msra.mxu0 0.0
        %802 = vmatprep.subr.mxu0 0.0
        %803 = vmatpush1.msra.mxu0 0.0
        %804 = vmatprep.subr.mxu0 0.0
        %805 = vmatpush1.msra.mxu0 0.0
        %806 = vmatprep.mubr.f32.mxu0 0.0
        %807 = vmatmul.mubr.f32.gmra.mrb[0].mxu0 %v737
        %v808 = vpop.f32.mrb[0].mxu0
        %v809 = vadd.f32 %v467, %v808
        %v810 = vpop.f32.mrb[0].mxu0
        %811 = vmatprep.mubr.f32.mxu0 0.0
        %812 = vmatmul.mubr.f32.gmra.mrb[0].mxu0 %v740
        %v813 = vpop.f32.mrb[0].mxu0
        %v814 = vadd.f32 %v472, %v813
        %v815 = vpop.f32.mrb[0].mxu0
        %816 = vdwg.mxu0
        %v818 = vsel %vm220, %v554, 0
        %v821 = vsel %vm220, %v559, 0
        %823 = vmatprep.subr.mxu0 0.0
        %824 = vmatpush1.msra.mxu0 %v563
        %825 = vmatprep.subr.mxu0 0.0
        %826 = vmatpush1.msra.mxu0 %v564
        %827 = vmatprep.subr.mxu0 0.0
        %828 = vmatpush1.msra.mxu0 0.0
        %829 = vmatprep.subr.mxu0 0.0
        %830 = vmatpush1.msra.mxu0 0.0
        %831 = vmatprep.subr.mxu0 0.0
        %832 = vmatpush1.msra.mxu0 0.0
        %833 = vmatprep.subr.mxu0 0.0
        %834 = vmatpush1.msra.mxu0 0.0
        %835 = vmatprep.subr.mxu0 0.0
        %836 = vmatpush1.msra.mxu0 0.0
        %837 = vmatprep.subr.mxu0 0.0
        %838 = vmatpush1.msra.mxu0 0.0
        %839 = vmatprep.subr.mxu0 0.0
        %840 = vmatpush1.msra.mxu0 0.0
        %841 = vmatprep.subr.mxu0 0.0
        %842 = vmatpush1.msra.mxu0 0.0
        %843 = vmatprep.subr.mxu0 0.0
        %844 = vmatpush1.msra.mxu0 0.0
        %845 = vmatprep.subr.mxu0 0.0
        %846 = vmatpush1.msra.mxu0 0.0
        %847 = vmatprep.subr.mxu0 0.0
        %848 = vmatpush1.msra.mxu0 0.0
        %849 = vmatprep.subr.mxu0 0.0
        %850 = vmatpush1.msra.mxu0 0.0
        %851 = vmatprep.subr.mxu0 0.0
        %852 = vmatpush1.msra.mxu0 0.0
        %853 = vmatprep.subr.mxu0 0.0
        %854 = vmatpush1.msra.mxu0 0.0
        %855 = vmatprep.subr.mxu0 0.0
        %856 = vmatpush1.msra.mxu0 0.0
        %857 = vmatprep.subr.mxu0 0.0
        %858 = vmatpush1.msra.mxu0 0.0
        %859 = vmatprep.subr.mxu0 0.0
        %860 = vmatpush1.msra.mxu0 0.0
        %861 = vmatprep.subr.mxu0 0.0
        %862 = vmatpush1.msra.mxu0 0.0
        %863 = vmatprep.subr.mxu0 0.0
        %864 = vmatpush1.msra.mxu0 0.0
        %865 = vmatprep.subr.mxu0 0.0
        %866 = vmatpush1.msra.mxu0 0.0
        %867 = vmatprep.subr.mxu0 0.0
        %868 = vmatpush1.msra.mxu0 0.0
        %869 = vmatprep.subr.mxu0 0.0
        %870 = vmatpush1.msra.mxu0 0.0
        %871 = vmatprep.subr.mxu0 0.0
        %872 = vmatpush1.msra.mxu0 0.0
        %873 = vmatprep.subr.mxu0 0.0
        %874 = vmatpush1.msra.mxu0 0.0
        %875 = vmatprep.subr.mxu0 0.0
        %876 = vmatpush1.msra.mxu0 0.0
        %877 = vmatprep.subr.mxu0 0.0
        %878 = vmatpush1.msra.mxu0 0.0
        %879 = vmatprep.subr.mxu0 0.0
        %880 = vmatpush1.msra.mxu0 0.0
        %881 = vmatprep.subr.mxu0 0.0
        %882 = vmatpush1.msra.mxu0 0.0
        %883 = vmatprep.subr.mxu0 0.0
        %884 = vmatpush1.msra.mxu0 0.0
        %885 = vmatprep.subr.mxu0 0.0
        %886 = vmatpush1.msra.mxu0 0.0
        %887 = vmatprep.mubr.f32.mxu0 0.0
        %888 = vmatmul.mubr.f32.gmra.mrb[0].mxu0 %v818
        %v889 = vpop.f32.mrb[0].mxu0
        %v890 = vadd.f32 %v728, %v889
        %v891 = vpop.f32.mrb[0].mxu0
        %892 = vmatprep.mubr.f32.mxu0 0.0
        %893 = vmatmul.mubr.f32.gmra.mrb[0].mxu0 %v821
        %v894 = vpop.f32.mrb[0].mxu0
        %v895 = vadd.f32 %v733, %v894
        %v896 = vpop.f32.mrb[0].mxu0
        %897 = vdwg.mxu0
        %v898 = vadd.f32 %v809, %v890
        %v899 = vadd.f32 %v814, %v895
        %900 = vst [vmem:[%s215] sm:$0xff] %v898
        %901 = vst [vmem:[%s215 + $0x8] sm:$0xff] %v899
        %s902 = sand.u32 %s95, 1
        %s903 = scalar_lea.sflag [#allocation4], %s902
        %s904 = sand.u32 %s95, 1
        %s905 = smul.addr %s904, 16
        %s906 = scalar_lea.vmem [#allocation8], %s905
        // Predicated region
        $region45: #{tpu_custom_call.1} parent=31 // pred_check
          %p907 = pneg %p105
        $region46: #{tpu_custom_call.1} parent=31 // pred_check_branch
          %909 = sbr.rel (%p907) target = $region48
        $region47: #{tpu_custom_call.1} parent=31 // pred_region
          %s911 = ssub.s32 256, 256
          %912 = vsyncadd %s903, %s911
          %s913 = smul.addr %s19, 2
          %s914 = smul.addr %s913, 128
          %s915 = scalar_lea.hbm %s3, %s914
          %s916 = sshll.u32 %s906, 4
          %s917 = int_to_ptr.vmem [resolvable:$true] %s916
          %922 = dma.vmem_to_hbm [thread:$0]  %s917, 256, %s915, %s903, 128, 128, 8
        $region48: #{tpu_custom_call.1} parent=31 // pred_fallthru
          _
      $region32: #{tpu_custom_call.1} parent=5 // pred_fallthru
        _
      %p923 = scmp.le.s32.totalorder 2, %s14
      // Predicated region
      $region49: #{tpu_custom_call.1} parent=5 // pred_check
        %p924 = pneg %p923
      $region50: #{tpu_custom_call.1} parent=5 // pred_check_branch
        %926 = sbr.rel (%p924) target = $region52
      $region51: #{tpu_custom_call.1} parent=5 // pred_region
        %s927 = ssub.s32 %s14, 2
        // Predicated region
        $region53: #{tpu_custom_call.1} parent=51 // pred_check
          %p928 = pneg %p111
        $region54: #{tpu_custom_call.1} parent=51 // pred_check_branch
          %930 = sbr.rel (%p928) target = $region56
        $region55: #{tpu_custom_call.1} parent=51 // pred_region
          %s931 = sand.u32 %s96, 1
          %s932 = scalar_lea.sflag [#allocation4], %s931
          %s933 = sand.u32 %s96, 1
          %s934 = smul.addr %s933, 16
          %s935 = scalar_lea.vmem [#allocation8], %s934
          %936 = dma.done %s932, 256
        $region56: #{tpu_custom_call.1} parent=51 // pred_fallthru
          _
      $region52: #{tpu_custom_call.1} parent=5 // pred_fallthru
        _
    $region6: #{tpu_custom_call.1} parent=1 // loop_footer
      %s18 = sadd.s32 1, %s14
    $region7: #{tpu_custom_call.1} parent=1 // loop_footer_branch
      %13 = sbr.rel target = $region3
    $region8: #{tpu_custom_call.1} parent=1 // loop_exit
      _
    %937 = vsyncpa [#allocation3], 1
    %s938 = scalar_lea.sflag [#allocation3], 1
    %939 = vsyncpa %s938, 1
    %940 = vsyncpa [#allocation6], 1
    %941 = vsyncpa [#allocation4], 1
    %s942 = scalar_lea.sflag [#allocation4], 1
    %943 = vsyncpa %s942, 1

</llo_original>
